<compile_context>
chip_gen: v7x
topology: tpu7x:2x2x1
jax: 0.10.0
libtpu: 0.0.40
codegen_flags: <defaults>
</compile_context>

<pallas_src>
import functools
import math

import jax
import jax.numpy as jnp
import numpy as np
from jax.experimental import pallas as pl
from jax.experimental.pallas import tpu as pltpu
from jax.scipy.special import logsumexp as _jsp_logsumexp

_NEG_BIG = -1e30  # -inf surrogate that never produces inf - inf = NaN


def _tile_stats(logit, tgt, logp, valid_rows):
    """Per-tile partial statistics.

    logit: (TN, C) f32, tgt: (TN, 1) i32, logp: (1, C) f32 = log(prior).
    valid_rows: None (mask-free fast path) or a static int < TN (ragged tile).
    Returns (cnt (1,C), sxp (1,C), lse_col (1,C), sum_lse (1,1)).
    """
    tn, c = logit.shape
    cls_ids = jax.lax.broadcasted_iota(jnp.int32, (tn, c), 1)
    sel = tgt == cls_ids                                   # (TN, C) bool, computed once
    la = logit + logp                                      # (TN, C) prior-adjusted

    if valid_rows is not None:
        row_valid = jax.lax.broadcasted_iota(jnp.int32, (tn, 1), 0) < valid_rows
        sel = jnp.logical_and(sel, row_valid)
        la = jnp.where(row_valid, la, _NEG_BIG)            # garbage rows -> tiny

    # per-class sample count and per-class picked-logit sum (raw logits, per spec)
    cnt = jnp.sum(sel.astype(jnp.float32), axis=0, keepdims=True)          # (1, C)
    sxp = jnp.sum(jnp.where(sel, logit, 0.0), axis=0, keepdims=True)       # (1, C)

    # row-wise LSE for the cross entropy (the only (TN, C) exp in the kernel)
    m = jnp.max(la, axis=-1, keepdims=True)                # (TN, 1)
    p = jnp.exp(la - m)                                    # (TN, C)
    lse_row = m + jnp.log(jnp.sum(p, axis=-1, keepdims=True))              # (TN, 1)
    if valid_rows is not None:
        lse_row = jnp.where(row_valid, lse_row, 0.0)
    sum_lse = jnp.sum(lse_row, axis=0, keepdims=True)      # (1, 1)

    # per-class LSE over this tile's rows, rebuilt from p (no second big exp):
    #   exp(la - r) = p * exp(m - r),  r = tile-wide max  =>  factor <= 1.
    # Masked rows get factor = exp(-1e30 - r) = 0 automatically.
    r = jnp.max(m, axis=0, keepdims=True)                  # (1, 1)
    factor = jnp.exp(m - r)                                # (TN, 1) -- cheap, TN elems
    col_sum = jnp.sum(p * factor, axis=0, keepdims=True)   # (1, C) = sum_n exp(la - r)
    lse_col = r + jnp.log(col_sum)                         # (1, C); -inf on underflow
    return cnt, sxp, lse_col, sum_lse


def _lade_kernel(logit_ref, target_ref, logp_ref, out_ref, *, last_valid_rows):
    """Writes per-tile partials into out_ref (block view shape (4, C))."""
    logit = logit_ref[...].astype(jnp.float32)             # native dtype -> f32 in VMEM
    tgt = target_ref[...]                                   # (TN, 1) int32
    logp = logp_ref[...]                                    # (1, C) f32
    c = logit.shape[1]

    def emit(valid_rows):
        cnt, sxp, lse_col, sum_lse = _tile_stats(logit, tgt, logp, valid_rows)
        out_ref[0:1, :] = cnt
        out_ref[1:2, :] = sxp
        out_ref[2:3, :] = lse_col
        out_ref[3:4, :] = jnp.broadcast_to(sum_lse, (1, c))

    if last_valid_rows is None:
        emit(None)                                          # every tile is full
    else:
        pid = pl.program_id(0)
        last = pl.num_programs(0) - 1

        @pl.when(pid != last)
        def _full_tile():                                   # mask-free fast path
            emit(None)

        @pl.when(pid == last)
        def _ragged_tile():                                 # only the last tile masks
            emit(last_valid_rows)


def _vmem_capacity_bytes():
    try:
        info = pltpu.get_tpu_info()
        cap = getattr(info, "vmem_capacity_bytes", None)
        if cap:
            return int(cap)
    except Exception:
        pass
    return 64 << 20   # conservative (v7x-sized) fallback; safe on every generation


def _pick_tile_rows(n, c, itemsize, vmem_cap):
    """Byte-based, generation-aware tile sizing (returns rows, multiple of 8)."""
    c_pad = ((max(c, 128) + 127) // 128) * 128
    # VMEM bytes per tile row: 2 double-buffered input copies, the lane-padded
    # (TN, 1) target block (x2), and ~5 f32 (TN, Cpad) intermediates Mosaic
    # materialises around the reduction boundaries.
    per_row = c_pad * (2 * itemsize + 5 * 4) + 2 * 128 * 4
    budget = min(vmem_cap // 2, 40 << 20)       # headroom; v7x only has 64 MiB total
    rows = max(8, budget // per_row)
    rows = min(rows, 8192)                      # step-overhead amortisation saturates
    if rows >= n:
        return n
    return max(8, (rows // 8) * 8)


def _vmem_limit_bytes(tn, c, itemsize, vmem_cap):
    c_pad = ((max(c, 128) + 127) // 128) * 128
    tn_pad = ((tn + 7) // 8) * 8
    buf = 2 * tn_pad * c_pad * itemsize         # logit blocks (double-buffered)
    buf += 2 * tn_pad * 128 * 4                 # target blocks (lane-padded to 128)
    buf += 2 * 8 * c_pad * 4                    # (1, C) log-prior constant
    buf += 2 * 8 * c_pad * 4                    # (4, C) per-tile output blocks
    buf += 5 * tn_pad * c_pad * 4               # f32 intermediates (la, p, selects...)
    limit = int(buf * 1.25) + (2 << 20)
    cap = max(16 << 20, min(int(vmem_cap * 0.75), vmem_cap - (16 << 20)))
    return max(16 << 20, min(limit, cap))


def lade_loss(logit, target, cls_num_list, remine_lambda=0.1,
              estim_loss_weight=0.1, tile_rows=None):
    """Pallas implementation of LADELoss.forward.

    logit: (N, C) float (f32 or bf16, passed in its native dtype),
    target: (N,) int, cls_num_list: (C,) float.  Returns a scalar float32.
    """
    n, c = logit.shape
    cls_num_list = jnp.asarray(cls_num_list, jnp.float32)
    prior = cls_num_list / jnp.sum(cls_num_list)             # (C,)
    log_prior = jnp.log(prior).astype(jnp.float32)           # (C,)

    itemsize = jnp.dtype(logit.dtype).itemsize
    vmem_cap = _vmem_capacity_bytes()
    if tile_rows is None:
        tn = _pick_tile_rows(n, c, itemsize, vmem_cap)
    else:
        tn = int(min(tile_rows, n))
        if tn < n:
            tn = max(8, (tn // 8) * 8)   # sublane divisibility for partial blocks
    num_tiles = (n + tn - 1) // tn
    rem = n % tn
    last_valid_rows = rem if rem else None

    target2d = target.astype(jnp.int32).reshape(n, 1)
    logp2d = log_prior.reshape(1, c)

    kernel = functools.partial(_lade_kernel, last_valid_rows=last_valid_rows)

    stats = pl.pallas_call(
        kernel,
        out_shape=jax.ShapeDtypeStruct((num_tiles, 4, c), jnp.float32),
        grid=(num_tiles,),
        in_specs=[
            pl.BlockSpec((tn, c), lambda i: (i, 0)),     # logit (native dtype)
            pl.BlockSpec((tn, 1), lambda i: (i, 0)),     # target
            pl.BlockSpec((1, c), lambda i: (0, 0)),      # log prior (only in-kernel const)
        ],
        out_specs=pl.BlockSpec((None, 4, c), lambda i: (i, 0, 0)),
        compiler_params=pltpu.CompilerParams(
            dimension_semantics=("parallel",),           # stateless tiles -> megacore
            vmem_limit_bytes=_vmem_limit_bytes(tn, c, itemsize, vmem_cap)),
    )(logit, target2d, logp2d)

    # ---- tiny (num_tiles, C) epilogue in plain JAX --------------------------
    cnt = jnp.sum(stats[:, 0, :], axis=0)                 # (C,) samples per class
    sxp = jnp.sum(stats[:, 1, :], axis=0)                 # (C,) picked-logit sums
    lse_col = _jsp_logsumexp(stats[:, 2, :], axis=0)      # (C,) LSE_n(logit + log prior)
    sum_lse = jnp.sum(stats[:, 3, 0])                     # scalar sum_n lse_row

    # cross entropy: sum_n la[n, t_n] = sum_c sxp[c] + sum_c cnt[c] * log_prior[c]
    ce_loss = (sum_lse - jnp.sum(sxp) - jnp.dot(cnt, log_prior)) / n

    # ReMINE estimator term: shift the column LSE from `la` scale to `x_q` scale.
    shift = (math.log(1.0 / c + 1e-9) - jnp.log(prior + 1e-9)) - log_prior
    second = (lse_col + shift) - math.log(n)              # per-class LSE_n(x_q) - log N
    first = sxp / (cnt + 1e-8)
    estim = (first - second) - second * second * remine_lambda
    # zero-weight (zero-prior) classes contribute exactly 0, as in the reference
    contrib = jnp.where(prior > 0, estim * prior, 0.0)
    estim_loss = -jnp.sum(contrib)

    return ce_loss + estim_loss_weight * estim_loss


def _lade_loss_ref(logit, target, cls_num_list, remine_lambda=0.1, estim_loss_weight=0.1):
    """Pure-JAX reference mirroring the PyTorch module (for verification)."""
    n, c = logit.shape
    logit = logit.astype(jnp.float32)
    cls_num_list = jnp.asarray(cls_num_list, jnp.float32)
    prior = cls_num_list / jnp.sum(cls_num_list)
    balanced_prior = 1.0 / c

    la = logit + jnp.log(prior)[None, :]
    lse = _jsp_logsumexp(la, axis=-1)
    picked = jnp.take_along_axis(la, target[:, None], axis=-1)[:, 0]
    ce_loss = jnp.mean(lse - picked)

    onehot = (target[None, :] == jnp.arange(c)[:, None]).astype(jnp.float32)  # (C, N)
    per_cls_pred_spread = logit.T * onehot                                    # (C, N)
    pred_spread = (logit - jnp.log(prior + 1e-9) + jnp.log(balanced_prior + 1e-9)).T
    num_samples_per_cls = jnp.sum(onehot, axis=-1)

    first = jnp.sum(per_cls_pred_spread, -1) / (num_samples_per_cls + 1e-8)
    second = _jsp_logsumexp(pred_spread, -1) - np.log(n)
    estim = (first - second) - second ** 2 * remine_lambda
    estim_loss = -jnp.sum(estim * prior)
    return ce_loss + estim_loss_weight * estim_loss


if __name__ == "__main__":
    key = jax.random.PRNGKey(0)

    # Case 1: tiny, single-tile, mask-free path.
    N, C = 8, 16
    k1, k2 = jax.random.split(key)
    logit = jax.random.normal(k1, (N, C), dtype=jnp.float32)
    target = jax.random.randint(k2, (N,), 0, C, dtype=jnp.int32)
    cls_num_list = jnp.arange(1, C + 1, dtype=jnp.float32)   # deterministic, imbalanced
    out = jax.block_until_ready(lade_loss(logit, target, cls_num_list))
    ref = jax.block_until_ready(_lade_loss_ref(logit, target, cls_num_list))
    assert jnp.allclose(out, ref, atol=1e-4, rtol=1e-4), (out, ref)

    # Case 2: multi-tile grid with a ragged final tile (exercises the pl.when
    # masked path, per-tile partials, and the logsumexp combine in the epilogue).
    N2, C2 = 50, 16
    k3, k4 = jax.random.split(k1)
    logit2 = jax.random.normal(k3, (N2, C2), dtype=jnp.float32)
    target2 = jax.random.randint(k4, (N2,), 0, C2, dtype=jnp.int32)
    cls_num_list2 = jnp.arange(1, C2 + 1, dtype=jnp.float32)
    out2 = jax.block_until_ready(lade_loss(logit2, target2, cls_num_list2, tile_rows=16))
    ref2 = jax.block_until_ready(_lade_loss_ref(logit2, target2, cls_num_list2))
    assert jnp.allclose(out2, ref2, atol=1e-4, rtol=1e-4), (out2, ref2)

    # Case 3: bf16 logits in their native dtype (half the HBM bytes), ragged tile.
    N3, C3 = 40, 24
    k5, k6 = jax.random.split(k3)
    logit3 = jax.random.normal(k5, (N3, C3), dtype=jnp.bfloat16)
    target3 = jax.random.randint(k6, (N3,), 0, C3, dtype=jnp.int32)
    cls_num_list3 = jnp.arange(1, C3 + 1, dtype=jnp.float32)
    out3 = jax.block_until_ready(lade_loss(logit3, target3, cls_num_list3, tile_rows=16))
    ref3 = jax.block_until_ready(_lade_loss_ref(logit3, target3, cls_num_list3))
    assert jnp.allclose(out3, ref3, atol=2e-3, rtol=2e-3), (out3, ref3)

    print("KERNEL_OK")
</pallas_src>

<mosaic_0001>
module attributes {stable_mosaic.version = 11 : i64} {
  func.func @_lade_kernel(%arg0: i32, %arg1: memref<8x16xf32, #tpu.memory_space<vmem>>, %arg2: memref<8x1xi32, #tpu.memory_space<vmem>>, %arg3: memref<1x16xf32, #tpu.memory_space<vmem>>, %arg4: memref<1x4x16xf32, #tpu.memory_space<vmem>>) attributes {dimension_semantics = [#tpu.dimension_semantics<parallel>], iteration_bounds = array<i64: 1>, scalar_prefetch = 0 : i64, scratch_operands = 0 : i64, tpu.core_type = #tpu.core_type<tc>, window_params = [{transform_indices = @transform_0, window_bounds = array<i64: 8, 16>}, {transform_indices = @transform_1, window_bounds = array<i64: 8, 1>}, {pipeline_mode = #tpu.pipeline_mode<synchronous>, transform_indices = @transform_2, window_bounds = array<i64: 1, 16>}, {transform_indices = @transform_3, window_bounds = array<i64: 1, 4, 16>}]} {
    %c0 = arith.constant 0 : index
    %c0_0 = arith.constant 0 : index
    %0 = vector.load %arg1[%c0, %c0_0] : memref<8x16xf32, #tpu.memory_space<vmem>>, vector<8x16xf32>
    %c0_1 = arith.constant 0 : index
    %c0_2 = arith.constant 0 : index
    %1 = vector.load %arg2[%c0_1, %c0_2] : memref<8x1xi32, #tpu.memory_space<vmem>>, vector<8x1xi32>
    %c0_3 = arith.constant 0 : index
    %c0_4 = arith.constant 0 : index
    %2 = vector.load %arg3[%c0_3, %c0_4] : memref<1x16xf32, #tpu.memory_space<vmem>>, vector<1x16xf32>
    %3 = tpu.iota {dimensions = array<i32: 1>} : vector<8x16xi32>
    %4 = vector.broadcast %1 : vector<8x1xi32> to vector<8x16xi32>
    %5 = arith.cmpi eq, %4, %3 : vector<8x16xi32>
    %6 = vector.broadcast %2 : vector<1x16xf32> to vector<8x16xf32>
    %7 = arith.addf %0, %6 : vector<8x16xf32>
    %8 = arith.extui %5 : vector<8x16xi1> to vector<8x16xi32>
    %9 = arith.sitofp %8 : vector<8x16xi32> to vector<8x16xf32>
    %cst = arith.constant dense<0.000000e+00> : vector<16xf32>
    %10 = vector.multi_reduction <add>, %9, %cst [0] : vector<8x16xf32> to vector<16xf32>
    %11 = vector.shape_cast %10 : vector<16xf32> to vector<1x16xf32>
    %cst_5 = arith.constant 0.000000e+00 : f32
    %12 = vector.broadcast %cst_5 : f32 to vector<8x16xf32>
    %13 = arith.select %5, %0, %12 : vector<8x16xi1>, vector<8x16xf32>
    %cst_6 = arith.constant dense<0.000000e+00> : vector<16xf32>
    %14 = vector.multi_reduction <add>, %13, %cst_6 [0] : vector<8x16xf32> to vector<16xf32>
    %15 = vector.shape_cast %14 : vector<16xf32> to vector<1x16xf32>
    %cst_7 = arith.constant dense<0xFF800000> : vector<8xf32>
    %16 = vector.multi_reduction <maximumf>, %7, %cst_7 [1] : vector<8x16xf32> to vector<8xf32>
    %17 = vector.shape_cast %16 : vector<8xf32> to vector<8x1xf32>
    %18 = vector.broadcast %17 : vector<8x1xf32> to vector<8x16xf32>
    %19 = arith.subf %7, %18 : vector<8x16xf32>
    %20 = math.exp %19 : vector<8x16xf32>
    %cst_8 = arith.constant dense<0.000000e+00> : vector<8xf32>
    %21 = vector.multi_reduction <add>, %20, %cst_8 [1] : vector<8x16xf32> to vector<8xf32>
    %22 = vector.shape_cast %21 : vector<8xf32> to vector<8x1xf32>
    %23 = math.log %22 : vector<8x1xf32>
    %24 = arith.addf %17, %23 : vector<8x1xf32>
    %cst_9 = arith.constant dense<0.000000e+00> : vector<1xf32>
    %25 = vector.multi_reduction <add>, %24, %cst_9 [0] : vector<8x1xf32> to vector<1xf32>
    %26 = vector.shape_cast %25 : vector<1xf32> to vector<1x1xf32>
    %cst_10 = arith.constant dense<0xFF800000> : vector<1xf32>
    %27 = vector.multi_reduction <maximumf>, %17, %cst_10 [0] : vector<8x1xf32> to vector<1xf32>
    %28 = vector.shape_cast %27 : vector<1xf32> to vector<1x1xf32>
    %29 = vector.broadcast %28 : vector<1x1xf32> to vector<8x1xf32>
    %30 = arith.subf %17, %29 : vector<8x1xf32>
    %31 = math.exp %30 : vector<8x1xf32>
    %32 = vector.broadcast %31 : vector<8x1xf32> to vector<8x16xf32>
    %33 = arith.mulf %20, %32 : vector<8x16xf32>
    %cst_11 = arith.constant dense<0.000000e+00> : vector<16xf32>
    %34 = vector.multi_reduction <add>, %33, %cst_11 [0] : vector<8x16xf32> to vector<16xf32>
    %35 = vector.shape_cast %34 : vector<16xf32> to vector<1x16xf32>
    %36 = math.log %35 : vector<1x16xf32>
    %37 = vector.broadcast %28 : vector<1x1xf32> to vector<1x16xf32>
    %38 = arith.addf %37, %36 : vector<1x16xf32>
    %c0_12 = arith.constant 0 : index
    %c0_13 = arith.constant 0 : index
    %c0_14 = arith.constant 0 : index
    %39 = vector.load %arg4[%c0_12, %c0_13, %c0_14] : memref<1x4x16xf32, #tpu.memory_space<vmem>>, vector<1x1x16xf32>
    %40 = vector.shape_cast %39 : vector<1x1x16xf32> to vector<1x16xf32>
    %41 = vector.shape_cast %11 : vector<1x16xf32> to vector<1x1x16xf32>
    tpu.vector_store %arg4[%c0_12, %c0_13, %c0_14], %41 {strides = array<i32>} : memref<1x4x16xf32, #tpu.memory_space<vmem>>, vector<1x1x16xf32>,
    %c0_15 = arith.constant 0 : index
    %c1 = arith.constant 1 : index
    %c0_16 = arith.constant 0 : index
    %42 = vector.load %arg4[%c0_15, %c1, %c0_16] : memref<1x4x16xf32, #tpu.memory_space<vmem>>, vector<1x1x16xf32>
    %43 = vector.shape_cast %42 : vector<1x1x16xf32> to vector<1x16xf32>
    %44 = vector.shape_cast %15 : vector<1x16xf32> to vector<1x1x16xf32>
    tpu.vector_store %arg4[%c0_15, %c1, %c0_16], %44 {strides = array<i32>} : memref<1x4x16xf32, #tpu.memory_space<vmem>>, vector<1x1x16xf32>,
    %c0_17 = arith.constant 0 : index
    %c2 = arith.constant 2 : index
    %c0_18 = arith.constant 0 : index
    %45 = vector.load %arg4[%c0_17, %c2, %c0_18] : memref<1x4x16xf32, #tpu.memory_space<vmem>>, vector<1x1x16xf32>
    %46 = vector.shape_cast %45 : vector<1x1x16xf32> to vector<1x16xf32>
    %47 = vector.shape_cast %38 : vector<1x16xf32> to vector<1x1x16xf32>
    tpu.vector_store %arg4[%c0_17, %c2, %c0_18], %47 {strides = array<i32>} : memref<1x4x16xf32, #tpu.memory_space<vmem>>, vector<1x1x16xf32>,
    %48 = vector.shape_cast %26 : vector<1x1xf32> to vector<1x1xf32>
    %49 = vector.broadcast %48 : vector<1x1xf32> to vector<1x16xf32>
    %c0_19 = arith.constant 0 : index
    %c3 = arith.constant 3 : index
    %c0_20 = arith.constant 0 : index
    %50 = vector.load %arg4[%c0_19, %c3, %c0_20] : memref<1x4x16xf32, #tpu.memory_space<vmem>>, vector<1x1x16xf32>
    %51 = vector.shape_cast %50 : vector<1x1x16xf32> to vector<1x16xf32>
    %52 = vector.shape_cast %49 : vector<1x16xf32> to vector<1x1x16xf32>
    tpu.vector_store %arg4[%c0_19, %c3, %c0_20], %52 {strides = array<i32>} : memref<1x4x16xf32, #tpu.memory_space<vmem>>, vector<1x1x16xf32>,
    return
  }
  func.func @transform_0(%arg0: i32) -> (i32, i32) {
    %c0_i32 = arith.constant 0 : i32
    %c0_i32_0 = arith.constant 0 : i32
    return %arg0, %c0_i32 : i32, i32
  }
  func.func @transform_1(%arg0: i32) -> (i32, i32) {
    %c0_i32 = arith.constant 0 : i32
    %c0_i32_0 = arith.constant 0 : i32
    return %arg0, %c0_i32 : i32, i32
  }
  func.func @transform_2(%arg0: i32) -> (i32, i32) {
    %c0_i32 = arith.constant 0 : i32
    %c0_i32_0 = arith.constant 0 : i32
    %c0_i32_1 = arith.constant 0 : i32
    return %c0_i32, %c0_i32_0 : i32, i32
  }
  func.func @transform_3(%arg0: i32) -> (i32, i32, i32) {
    %c0_i32 = arith.constant 0 : i32
    %c0_i32_0 = arith.constant 0 : i32
    %c0_i32_1 = arith.constant 0 : i32
    return %arg0, %c0_i32, %c0_i32_0 : i32, i32, i32
  }
}

</mosaic_0001>

<llo_original>
// kernel: tpu_custom_call.1
$region0: #{tpu_custom_call.1}
  #allocation0 [shape = 'u32[]', space=smem, size = 0x4, offset = 0x4, fixed_abs, tag = 'smem constant byte address 0x4 - core index']
  #allocation1 [shape = 'u32[144,128]{1,0:T(1,128)}', space=vmem, size = 0x12000, scoped, tag = 'internal scratch']
  %s0 = inlined_call_operand.vmem [shape: f32[8,16], index: 0, kind: input, shape index: {}]
  %s1 = inlined_call_operand.vmem [shape: s32[8,1], index: 1, kind: input, shape index: {}]
  %s2 = inlined_call_operand.vmem [shape: f32[1,16], index: 2, kind: input, shape index: {}]
  %s3 = inlined_call_operand.hbm [shape: f32[1,4,16], index: 3, kind: output, shape index: {}]
  %s4 = sld [smem:[#allocation0]]
  $region22: #{tpu_custom_call.1} parent=0
    _
  %s6 = ssub.s32 1, %s4
  %s7 = scalar_select 0, %s6, %s4
  $region1: #{tpu_custom_call.1} parent=0
    #allocation2 [shape = 'u8[2048]{0}', space=vmem, size = 0x800, scoped, tag = 'output window, operand 0, single buffered']
    #allocation3 [shape = 's32[1]{0}', space=sflag, size = 0x4, scoped, tag = 'scoped memory for tpu_custom_call.1']
    %8 = vsyncpa [#allocation3], 0
    // Predicated region
    $region2: #{tpu_custom_call.1} parent=1 // pred_check
      _
    $region3: #{tpu_custom_call.1} parent=1 // pred_check_branch
      %10 = sbr.rel (0) target = $region5
    $region4: #{tpu_custom_call.1} parent=1 // pred_region
      _
    $region5: #{tpu_custom_call.1} parent=1 // pred_fallthru
      _
    // Predicated region
    $region6: #{tpu_custom_call.1} parent=1 // pred_check
      _
    $region7: #{tpu_custom_call.1} parent=1 // pred_check_branch
      %12 = sbr.rel (0) target = $region9
    $region8: #{tpu_custom_call.1} parent=1 // pred_region
      _
    $region9: #{tpu_custom_call.1} parent=1 // pred_fallthru
      _
    // Predicated region
    $region10: #{tpu_custom_call.1} parent=1 // pred_check
      _
    $region11: #{tpu_custom_call.1} parent=1 // pred_check_branch
      %14 = sbr.rel (0) target = $region13
    $region12: #{tpu_custom_call.1} parent=1 // pred_region
      _
    $region13: #{tpu_custom_call.1} parent=1 // pred_fallthru
      _
    %v15 = vld [vmem:[%s0] sm:$0xff]
    %v16 = vld [vmem:[%s1] sm:$0xff]
    %v17 = vld [vmem:[%s2] sm:$0x1]
    %v18 = vlaneseq
    %v19 = vand.u32 %v18, 127
    %20 = vset.pattern.permute.xlu0 0
    %21 = vperm.xlu0 %20, %v16
    %v22 = vpop.permute.xlu0 %21
    %vm23 = vcmp.eq.s32.totalorder %v22, %v19
    %v25 = vlaneseq
    %v26 = vshrl.u32 %v25, 7
    %v27 = vsub.s32 0, %v26
    %v28 = vrot.slane %v17, %v27
    %v30 = vadd.f32 %v15, %v28
    %v31 = vsel %vm23, 1, 0
    %v32 = vcvt.s32.f32 %v31
    %vm33 = vcmask 130048
    %v34 = vsel %vm33, %v32, 0.0
    %v35 = vrot.slane %v34, 4
    %v36 = vadd.f32 %v34, %v35
    %v37 = vrot.slane %v36, 2
    %v38 = vadd.f32 %v36, %v37
    %v39 = vrot.slane %v38, 1
    %v40 = vadd.f32 %v38, %v39
    %v41 = vsel %vm23, %v15, 0.0
    %v42 = vsel %vm33, %v41, 0.0
    %v43 = vrot.slane %v42, 4
    %v44 = vadd.f32 %v42, %v43
    %v45 = vrot.slane %v44, 2
    %v46 = vadd.f32 %v44, %v45
    %v47 = vrot.slane %v46, 1
    %v48 = vadd.f32 %v46, %v47
    %v49 = vsel %vm33, %v30, -inf
    %50 = vmax.xlane.f32.xlu0 %v49
    %v51 = vpop.xlane.xlu0 %50
    %v52 = vsub.f32 %v30, %v51
    %v53 = vmul.f32 %v52, 1.442695
    %v54 = vpow.pop %v53
    %v55 = vsel %vm33, %v54, 0.0
    %56 = vadd.xlane.f32.xlu0 %v55
    %v57 = vpop.xlane.xlu0 %56
    %v58 = vlog2.pop %v57
    %v59 = vmul.f32 %v58, 0.6931472
    %v60 = vadd.f32 %v51, %v59
    %v61 = vrot.slane %v60, 4
    %v62 = vadd.f32 %v60, %v61
    %v63 = vrot.slane %v62, 2
    %v64 = vadd.f32 %v62, %v63
    %v65 = vrot.slane %v64, 1
    %v66 = vadd.f32 %v64, %v65
    %v67 = vrot.slane %v51, 4
    %v68 = vmax.f32 %v51, %v67
    %v69 = vrot.slane %v68, 2
    %v70 = vmax.f32 %v68, %v69
    %v71 = vrot.slane %v70, 1
    %v72 = vmax.f32 %v70, %v71
    %v73 = vsub.f32 %v51, %v72
    %v74 = vmul.f32 %v73, 1.442695
    %v75 = vpow.pop %v74
    %v76 = vmul.f32 %v54, %v75
    %v77 = vsel %vm33, %v76, 0.0
    %v78 = vrot.slane %v77, 4
    %v79 = vadd.f32 %v77, %v78
    %v80 = vrot.slane %v79, 2
    %v81 = vadd.f32 %v79, %v80
    %v82 = vrot.slane %v81, 1
    %v83 = vadd.f32 %v81, %v82
    %v84 = vlog2.pop %v83
    %v85 = vmul.f32 %v84, 0.6931472
    %v86 = vadd.f32 %v72, %v85
    %vm87 = vcmask 122880
    %88 = vst.msk [vmem:[#allocation2] sm:$0x1] %vm87, %v40
    %89 = vst.msk [vmem:[#allocation2 + $0x1] sm:$0x1] %vm87, %v48
    %90 = vst.msk [vmem:[#allocation2 + $0x2] sm:$0x1] %vm87, %v86
    %91 = vst.msk [vmem:[#allocation2 + $0x3] sm:$0x1] %vm87, %v66
    // Predicated region
    $region14: #{tpu_custom_call.1} parent=1 // pred_check
      _
    $region15: #{tpu_custom_call.1} parent=1 // pred_check_branch
      %93 = sbr.rel (0) target = $region17
    $region16: #{tpu_custom_call.1} parent=1 // pred_region
      %s95 = ssub.s32 64, 64
      %96 = vsyncadd [#allocation3], %s95
      %s98 = sshll.u32 [#allocation2], 4
      %s99 = int_to_ptr.vmem [resolvable:$true] %s98
      %101 = dma.vmem_to_hbm [thread:$0]  %s99, 64, %s3, [#allocation3]
    $region17: #{tpu_custom_call.1} parent=1 // pred_fallthru
      _
    // Predicated region
    $region18: #{tpu_custom_call.1} parent=1 // pred_check
      _
    $region19: #{tpu_custom_call.1} parent=1 // pred_check_branch
      %103 = sbr.rel (0) target = $region21
    $region20: #{tpu_custom_call.1} parent=1 // pred_region
      %104 = dma.done [#allocation3], 64
    $region21: #{tpu_custom_call.1} parent=1 // pred_fallthru
      _
    %105 = vsyncpa [#allocation3], 1

</llo_original>
